<compile_context>
chip_gen: v7x
topology: tpu7x:2x2x1
jax: 0.10.0
libtpu: 0.0.40
codegen_flags: <defaults>
</compile_context>

<pallas_src>
import jax
import jax.numpy as jnp
from jax.experimental import pallas as pl
from jax.experimental.pallas import tpu as pltpu


def adap_attention_kernel(x_ref, adjn_ref, w_ref, b_ref, att_ref):
    """x_ref: [BB*N, Din], adjn_ref: [N, N], w_ref: [Din, Dv], b_ref: [1, Dv],
    att_ref: [N, BB*Dv] (batch packed along the lane dimension)."""
    N = adjn_ref.shape[0]
    Dv = w_ref.shape[1]
    BB = x_ref.shape[0] // N

    # Linear for all BB batch elements at once: one MXU matmul over BB*N rows
    # instead of B tiny N-row matmuls.
    v = jnp.dot(x_ref[...], w_ref[...], preferred_element_type=jnp.float32)
    v = v + b_ref[...]                       # bias added once per grid step

    # Pack batch into the lane dimension: [BB*N, Dv] -> [N, BB*Dv] with
    # v_packed[:, bb*Dv:(bb+1)*Dv] == v of batch bb (static sublane-aligned
    # row slices + lane concat; XLU-side relayout, off the MXU/VALU path).
    v_packed = jnp.concatenate(
        [v[bb * N:(bb + 1) * N, :] for bb in range(BB)], axis=-1)

    # att = adj_new @ v for all BB batches as one lane-dense
    # [N, N] @ [N, BB*Dv] MXU matmul; result stored as a single wide slab.
    att = jnp.dot(adjn_ref[...], v_packed, preferred_element_type=jnp.float32)
    att_ref[...] = att.astype(att_ref.dtype)


def _pick_batch_block(B, N, Din, Dv, target_rows=256, max_block_bytes=4 << 20):
    """Smallest divisor BB of B with BB*N >= target_rows (MXU fill), capped by
    a per-block byte budget; falls back to the largest divisor that fits."""
    best = 1
    for bb in range(1, B + 1):
        if B % bb:
            continue
        if bb > 1 and bb * N * max(Din, Dv) * 4 > max_block_bytes:
            break
        best = bb
        if bb * N >= target_rows:
            break
    return best


def _vmem_limit_bytes(N, Din, Dv, BB):
    f32 = 4
    resident = (N * N + Din * Dv + Dv) * f32 * 2         # invariant blocks
    streamed = 2 * (BB * N * Din + N * BB * Dv) * f32    # double-buffered x/att
    est = int((resident + streamed) * 1.5) + (2 << 20)   # headroom
    return max(16 << 20, min(est, 64 << 20))


def adap_attention(x, adj, mask, w_v, b_v):
    """x: [B, N, Din], adj/mask: [N, N], w_v: [Din, Dv], b_v: [Dv].
    Returns (att [B, N, Dv], adj_new [N, N]) — same as Adap_attention.forward."""
    B, N, Din = x.shape
    Dv = w_v.shape[1]

    # Hoisted out of the per-batch grid: batch-invariant, one fused XLA pass.
    adj_new = (1.0 - adj) * mask

    BB = _pick_batch_block(B, N, Din, Dv)
    nb = B // BB

    x2d = x.reshape(B * N, Din)        # free metadata reshape
    b2d = b_v.reshape(1, Dv)

    grid_spec = pltpu.PrefetchScalarGridSpec(
        num_scalar_prefetch=0,
        grid=(nb,),
        in_specs=[
            # Streamed per grid step: BB batch elements worth of rows.
            pl.BlockSpec((BB * N, Din), lambda i: (i, 0)),
            # Batch-invariant inputs: constant index_map -> resident across
            # grid steps (no re-DMA, no redundant recompute).
            pl.BlockSpec((N, N), lambda i: (0, 0)),
            pl.BlockSpec((Din, Dv), lambda i: (0, 0)),
            pl.BlockSpec((1, Dv), lambda i: (0, 0)),
        ],
        out_specs=pl.BlockSpec((None, N, BB * Dv), lambda i: (i, 0, 0)),
    )

    att_packed = pl.pallas_call(
        adap_attention_kernel,
        grid_spec=grid_spec,
        out_shape=jax.ShapeDtypeStruct((nb, N, BB * Dv), jnp.float32),
        compiler_params=pltpu.CompilerParams(
            # No cross-step output reuse -> batch axis is cleanly parallel
            # (2 TensorCores on v7x; no effect on v5e/v6e).
            dimension_semantics=("parallel",),
            vmem_limit_bytes=_vmem_limit_bytes(N, Din, Dv, BB),
        ),
    )(x2d, adj_new, w_v, b2d)

    # Unpack the lane-packed batch: [nb, N, BB*Dv] -> [B, N, Dv].
    att = (att_packed.reshape(nb, N, BB, Dv)
           .transpose(0, 2, 1, 3)
           .reshape(B, N, Dv))
    # TODO(synk): for very large graphs (N >= ~2048) add a second grid axis
    # tiling the adj_new / att rows so the N x N block fits v7x's 64 MiB VMEM;
    # not needed at these shapes.
    return att, adj_new


def reference(x, adj, mask, w_v, b_v):
    adj_new = (1.0 - adj) * mask
    v = jnp.einsum("bnd,dv->bnv", x, w_v) + b_v
    att = jnp.einsum("nm,bmv->bnv", adj_new, v)
    return att, adj_new


if __name__ == "__main__":
    # Small shapes consistent with the module: B batches of N graph nodes.
    B, N, Din, Dv = 2, 8, 32, 32

    key = jax.random.PRNGKey(0)
    k_x, k_adj, k_mask, k_w, k_b = jax.random.split(key, 5)

    x = jax.random.normal(k_x, (B, N, Din), dtype=jnp.float32)
    # adjacency-like input in {0, 1}
    adj = (jax.random.uniform(k_adj, (N, N)) > 0.5).astype(jnp.float32)

    # mask: xavier_normal_ with gain=0.0003 -> std = gain * sqrt(2 / (N + N))
    mask_std = 0.0003 * (2.0 / (N + N)) ** 0.5
    mask = mask_std * jax.random.normal(k_mask, (N, N), dtype=jnp.float32)

    # Linear(dim_in, dim_v): PyTorch default uniform(-1/sqrt(Din), 1/sqrt(Din))
    bound = 1.0 / (Din ** 0.5)
    w_v = jax.random.uniform(k_w, (Din, Dv), minval=-bound, maxval=bound,
                             dtype=jnp.float32)
    b_v = jax.random.uniform(k_b, (Dv,), minval=-bound, maxval=bound,
                             dtype=jnp.float32)

    att, adj_new = adap_attention(x, adj, mask, w_v, b_v)
    jax.block_until_ready((att, adj_new))

    att_ref, adj_ref = reference(x, adj, mask, w_v, b_v)
    assert jnp.allclose(att, att_ref, atol=1e-5, rtol=1e-5), "att mismatch"
    assert jnp.allclose(adj_new, adj_ref, atol=1e-6, rtol=1e-6), "adj mismatch"

    print("KERNEL_OK")
</pallas_src>

<mosaic_0001>
module attributes {stable_mosaic.version = 11 : i64} {
  func.func @adap_attention_kernel(%arg0: i32, %arg1: memref<16x32xf32, #tpu.memory_space<vmem>>, %arg2: memref<8x8xf32, #tpu.memory_space<vmem>>, %arg3: memref<32x32xf32, #tpu.memory_space<vmem>>, %arg4: memref<1x32xf32, #tpu.memory_space<vmem>>, %arg5: memref<1x8x64xf32, #tpu.memory_space<vmem>>) attributes {dimension_semantics = [#tpu.dimension_semantics<parallel>], iteration_bounds = array<i64: 1>, scalar_prefetch = 0 : i64, scratch_operands = 0 : i64, tpu.core_type = #tpu.core_type<tc>, window_params = [{transform_indices = @transform_0, window_bounds = array<i64: 16, 32>}, {pipeline_mode = #tpu.pipeline_mode<synchronous>, transform_indices = @transform_1, window_bounds = array<i64: 8, 8>}, {pipeline_mode = #tpu.pipeline_mode<synchronous>, transform_indices = @transform_2, window_bounds = array<i64: 32, 32>}, {pipeline_mode = #tpu.pipeline_mode<synchronous>, transform_indices = @transform_3, window_bounds = array<i64: 1, 32>}, {transform_indices = @transform_4, window_bounds = array<i64: 1, 8, 64>}]} {
    %c0 = arith.constant 0 : index
    %c0_0 = arith.constant 0 : index
    %0 = vector.load %arg1[%c0, %c0_0] : memref<16x32xf32, #tpu.memory_space<vmem>>, vector<16x32xf32>
    %c0_1 = arith.constant 0 : index
    %c0_2 = arith.constant 0 : index
    %1 = vector.load %arg3[%c0_1, %c0_2] : memref<32x32xf32, #tpu.memory_space<vmem>>, vector<32x32xf32>
    %cst = arith.constant dense<0.000000e+00> : vector<16x32xf32>
    %2 = tpu.matmul %0, %1, %cst {dimension_numbers = #tpu.dot_dimension_numbers<[1], [0], [0], [1], [0, 0, 1, 1], [], []>} : vector<16x32xf32>, vector<32x32xf32>, vector<16x32xf32> -> vector<16x32xf32>
    %c0_3 = arith.constant 0 : index
    %c0_4 = arith.constant 0 : index
    %3 = vector.load %arg4[%c0_3, %c0_4] : memref<1x32xf32, #tpu.memory_space<vmem>>, vector<1x32xf32>
    %4 = vector.broadcast %3 : vector<1x32xf32> to vector<16x32xf32>
    %5 = arith.addf %2, %4 : vector<16x32xf32>
    %6 = vector.extract_strided_slice %5 {offsets = [0, 0], sizes = [8, 32], strides = [1, 1]} : vector<16x32xf32> to vector<8x32xf32>
    %7 = vector.extract_strided_slice %5 {offsets = [8, 0], sizes = [8, 32], strides = [1, 1]} : vector<16x32xf32> to vector<8x32xf32>
    %8 = tpu.concatenate %6, %7 in 1 : vector<8x32xf32>, vector<8x32xf32> -> vector<8x64xf32>
    %c0_5 = arith.constant 0 : index
    %c0_6 = arith.constant 0 : index
    %9 = vector.load %arg2[%c0_5, %c0_6] : memref<8x8xf32, #tpu.memory_space<vmem>>, vector<8x8xf32>
    %cst_7 = arith.constant dense<0.000000e+00> : vector<8x64xf32>
    %10 = tpu.matmul %9, %8, %cst_7 {dimension_numbers = #tpu.dot_dimension_numbers<[1], [0], [0], [1], [0, 0, 1, 1], [], []>} : vector<8x8xf32>, vector<8x64xf32>, vector<8x64xf32> -> vector<8x64xf32>
    %c0_8 = arith.constant 0 : index
    %c0_9 = arith.constant 0 : index
    %c0_10 = arith.constant 0 : index
    %11 = vector.load %arg5[%c0_8, %c0_9, %c0_10] : memref<1x8x64xf32, #tpu.memory_space<vmem>>, vector<1x8x64xf32>
    %12 = vector.shape_cast %11 : vector<1x8x64xf32> to vector<8x64xf32>
    %13 = vector.shape_cast %10 : vector<8x64xf32> to vector<1x8x64xf32>
    tpu.vector_store %arg5[%c0_8, %c0_9, %c0_10], %13 {strides = array<i32>} : memref<1x8x64xf32, #tpu.memory_space<vmem>>, vector<1x8x64xf32>,
    return
  }
  func.func @transform_0(%arg0: i32) -> (i32, i32) {
    %c0_i32 = arith.constant 0 : i32
    %c0_i32_0 = arith.constant 0 : i32
    return %arg0, %c0_i32 : i32, i32
  }
  func.func @transform_1(%arg0: i32) -> (i32, i32) {
    %c0_i32 = arith.constant 0 : i32
    %c0_i32_0 = arith.constant 0 : i32
    %c0_i32_1 = arith.constant 0 : i32
    return %c0_i32, %c0_i32_0 : i32, i32
  }
  func.func @transform_2(%arg0: i32) -> (i32, i32) {
    %c0_i32 = arith.constant 0 : i32
    %c0_i32_0 = arith.constant 0 : i32
    %c0_i32_1 = arith.constant 0 : i32
    return %c0_i32, %c0_i32_0 : i32, i32
  }
  func.func @transform_3(%arg0: i32) -> (i32, i32) {
    %c0_i32 = arith.constant 0 : i32
    %c0_i32_0 = arith.constant 0 : i32
    %c0_i32_1 = arith.constant 0 : i32
    return %c0_i32, %c0_i32_0 : i32, i32
  }
  func.func @transform_4(%arg0: i32) -> (i32, i32, i32) {
    %c0_i32 = arith.constant 0 : i32
    %c0_i32_0 = arith.constant 0 : i32
    %c0_i32_1 = arith.constant 0 : i32
    return %arg0, %c0_i32, %c0_i32_0 : i32, i32, i32
  }
}

</mosaic_0001>

<llo_original>
// kernel: tpu_custom_call.1
$region0: #{tpu_custom_call.1}
  #allocation0 [shape = 'u32[]', space=smem, size = 0x4, offset = 0x4, fixed_abs, tag = 'smem constant byte address 0x4 - core index']
  #allocation1 [shape = 'u32[144,128]{1,0:T(1,128)}', space=vmem, size = 0x12000, scoped, tag = 'internal scratch']
  %s0 = inlined_call_operand.hbm [shape: f32[16,32], index: 0, kind: input, shape index: {}]
  %s1 = inlined_call_operand.hbm [shape: f32[8,8], index: 1, kind: input, shape index: {}]
  %s2 = inlined_call_operand.hbm [shape: f32[32,32], index: 2, kind: input, shape index: {}]
  %s3 = inlined_call_operand.vmem [shape: f32[1,32], index: 3, kind: input, shape index: {}]
  %s4 = inlined_call_operand.hbm [shape: f32[1,8,64], index: 4, kind: output, shape index: {}]
  %s5 = sld [smem:[#allocation0]]
  $region38: #{tpu_custom_call.1} parent=0
    _
  %s7 = ssub.s32 1, %s5
  %s8 = scalar_select 0, %s7, %s5
  $region1: #{tpu_custom_call.1} parent=0
    #allocation2 [shape = 'u8[8192]{0}', space=vmem, size = 0x2000, scoped, tag = 'input window, operand 0, single buffered']
    #allocation3 [shape = 's32[1]{0}', space=sflag, size = 0x4, scoped, tag = 'scoped memory for tpu_custom_call.1']
    #allocation4 [shape = 's32[1]{0}', space=sflag, size = 0x4, scoped, tag = 'scoped memory for tpu_custom_call.1']
    #allocation5 [shape = 'u8[4096]{0}', space=vmem, size = 0x1000, scoped, tag = 'input window, operand 1, single buffered']
    #allocation6 [shape = 's32[1]{0}', space=sflag, size = 0x4, scoped, tag = 'scoped memory for tpu_custom_call.1']
    #allocation7 [shape = 'u8[16384]{0}', space=vmem, size = 0x4000, scoped, tag = 'input window, operand 2, single buffered']
    #allocation8 [shape = 'u8[4096]{0}', space=vmem, size = 0x1000, scoped, tag = 'output window, operand 0, single buffered']
    %9 = vsyncpa [#allocation3], 0
    %10 = vsyncpa [#allocation6], 0
    %11 = vsyncpa [#allocation4], 0
    // Predicated region
    $region2: #{tpu_custom_call.1} parent=1 // pred_check
      _
    $region3: #{tpu_custom_call.1} parent=1 // pred_check_branch
      %13 = sbr.rel (0) target = $region5
    $region4: #{tpu_custom_call.1} parent=1 // pred_region
      %s15 = ssub.s32 256, 256
      %16 = vsyncadd [#allocation3], %s15
      %s17 = sshll.u32 [#allocation2], 4
      %s18 = int_to_ptr.vmem [resolvable:$true] %s17
      %23 = dma.hbm_to_vmem [thread:$0]  %s0, 256, %s18, [#allocation3], 128, 128, 8
    $region5: #{tpu_custom_call.1} parent=1 // pred_fallthru
      _
    // Predicated region
    $region6: #{tpu_custom_call.1} parent=1 // pred_check
      _
    $region7: #{tpu_custom_call.1} parent=1 // pred_check_branch
      %25 = sbr.rel (0) target = $region9
    $region8: #{tpu_custom_call.1} parent=1 // pred_region
      %s27 = ssub.s32 128, 128
      %28 = vsyncadd [#allocation6], %s27
      %s30 = sshll.u32 [#allocation5], 4
      %s31 = int_to_ptr.vmem [resolvable:$true] %s30
      %33 = dma.hbm_to_vmem [thread:$0]  %s1, 128, %s31, [#allocation6]
    $region9: #{tpu_custom_call.1} parent=1 // pred_fallthru
      _
    // Predicated region
    $region10: #{tpu_custom_call.1} parent=1 // pred_check
      _
    $region11: #{tpu_custom_call.1} parent=1 // pred_check_branch
      %35 = sbr.rel (0) target = $region13
    $region12: #{tpu_custom_call.1} parent=1 // pred_region
      %s37 = ssub.s32 512, 512
      %38 = vsyncadd [#allocation6], %s37
      %s39 = sshll.u32 [#allocation7], 4
      %s40 = int_to_ptr.vmem [resolvable:$true] %s39
      %45 = dma.hbm_to_vmem [thread:$0]  %s2, 512, %s40, [#allocation6], 128, 128, 8
    $region13: #{tpu_custom_call.1} parent=1 // pred_fallthru
      _
    // Predicated region
    $region14: #{tpu_custom_call.1} parent=1 // pred_check
      _
    $region15: #{tpu_custom_call.1} parent=1 // pred_check_branch
      %47 = sbr.rel (0) target = $region17
    $region16: #{tpu_custom_call.1} parent=1 // pred_region
      _
    $region17: #{tpu_custom_call.1} parent=1 // pred_fallthru
      _
    // Predicated region
    $region18: #{tpu_custom_call.1} parent=1 // pred_check
      _
    $region19: #{tpu_custom_call.1} parent=1 // pred_check_branch
      %49 = sbr.rel (0) target = $region21
    $region20: #{tpu_custom_call.1} parent=1 // pred_region
      %50 = dma.done [#allocation3], 256
    $region21: #{tpu_custom_call.1} parent=1 // pred_fallthru
      _
    // Predicated region
    $region22: #{tpu_custom_call.1} parent=1 // pred_check
      _
    $region23: #{tpu_custom_call.1} parent=1 // pred_check_branch
      %52 = sbr.rel (0) target = $region25
    $region24: #{tpu_custom_call.1} parent=1 // pred_region
      %53 = dma.done [#allocation6], 128
    $region25: #{tpu_custom_call.1} parent=1 // pred_fallthru
      _
    // Predicated region
    $region26: #{tpu_custom_call.1} parent=1 // pred_check
      _
    $region27: #{tpu_custom_call.1} parent=1 // pred_check_branch
      %55 = sbr.rel (0) target = $region29
    $region28: #{tpu_custom_call.1} parent=1 // pred_region
      %56 = dma.done [#allocation6], 512
    $region29: #{tpu_custom_call.1} parent=1 // pred_fallthru
      _
    %v57 = vld [vmem:[#allocation2] sm:$0xff]
    %v58 = vld [vmem:[#allocation2 + $0x8] sm:$0xff]
    %v59 = vld [vmem:[#allocation7] sm:$0xff]
    %v60 = vld [vmem:[#allocation7 + $0x8] sm:$0xff]
    %v61 = vld [vmem:[#allocation7 + $0x10] sm:$0xff]
    %v62 = vld [vmem:[#allocation7 + $0x18] sm:$0xff]
    %v63 = vld [vmem:[%s3] sm:$0x1]
    %v65 = vlaneseq
    %v66 = vshrl.u32 %v65, 7
    %v67 = vsub.s32 0, %v66
    %v68 = vrot.slane %v63, %v67
    %vm70 = vcmask 261120
    %v72 = vsel %vm70, %v57, 0
    %v75 = vsel %vm70, %v58, 0
    %77 = vmatprep.subr.mxu0 0.0
    %78 = vmatpush1.msra.mxu0 %v59
    %79 = vmatprep.subr.mxu0 0.0
    %80 = vmatpush1.msra.mxu0 %v60
    %81 = vmatprep.subr.mxu0 0.0
    %82 = vmatpush1.msra.mxu0 %v61
    %83 = vmatprep.subr.mxu0 0.0
    %84 = vmatpush1.msra.mxu0 %v62
    %85 = vmatprep.subr.mxu0 0.0
    %86 = vmatpush1.msra.mxu0 0.0
    %87 = vmatprep.subr.mxu0 0.0
    %88 = vmatpush1.msra.mxu0 0.0
    %89 = vmatprep.subr.mxu0 0.0
    %90 = vmatpush1.msra.mxu0 0.0
    %91 = vmatprep.subr.mxu0 0.0
    %92 = vmatpush1.msra.mxu0 0.0
    %93 = vmatprep.subr.mxu0 0.0
    %94 = vmatpush1.msra.mxu0 0.0
    %95 = vmatprep.subr.mxu0 0.0
    %96 = vmatpush1.msra.mxu0 0.0
    %97 = vmatprep.subr.mxu0 0.0
    %98 = vmatpush1.msra.mxu0 0.0
    %99 = vmatprep.subr.mxu0 0.0
    %100 = vmatpush1.msra.mxu0 0.0
    %101 = vmatprep.subr.mxu0 0.0
    %102 = vmatpush1.msra.mxu0 0.0
    %103 = vmatprep.subr.mxu0 0.0
    %104 = vmatpush1.msra.mxu0 0.0
    %105 = vmatprep.subr.mxu0 0.0
    %106 = vmatpush1.msra.mxu0 0.0
    %107 = vmatprep.subr.mxu0 0.0
    %108 = vmatpush1.msra.mxu0 0.0
    %109 = vmatprep.subr.mxu0 0.0
    %110 = vmatpush1.msra.mxu0 0.0
    %111 = vmatprep.subr.mxu0 0.0
    %112 = vmatpush1.msra.mxu0 0.0
    %113 = vmatprep.subr.mxu0 0.0
    %114 = vmatpush1.msra.mxu0 0.0
    %115 = vmatprep.subr.mxu0 0.0
    %116 = vmatpush1.msra.mxu0 0.0
    %117 = vmatprep.subr.mxu0 0.0
    %118 = vmatpush1.msra.mxu0 0.0
    %119 = vmatprep.subr.mxu0 0.0
    %120 = vmatpush1.msra.mxu0 0.0
    %121 = vmatprep.subr.mxu0 0.0
    %122 = vmatpush1.msra.mxu0 0.0
    %123 = vmatprep.subr.mxu0 0.0
    %124 = vmatpush1.msra.mxu0 0.0
    %125 = vmatprep.subr.mxu0 0.0
    %126 = vmatpush1.msra.mxu0 0.0
    %127 = vmatprep.subr.mxu0 0.0
    %128 = vmatpush1.msra.mxu0 0.0
    %129 = vmatprep.subr.mxu0 0.0
    %130 = vmatpush1.msra.mxu0 0.0
    %131 = vmatprep.subr.mxu0 0.0
    %132 = vmatpush1.msra.mxu0 0.0
    %133 = vmatprep.subr.mxu0 0.0
    %134 = vmatpush1.msra.mxu0 0.0
    %135 = vmatprep.subr.mxu0 0.0
    %136 = vmatpush1.msra.mxu0 0.0
    %137 = vmatprep.subr.mxu0 0.0
    %138 = vmatpush1.msra.mxu0 0.0
    %139 = vmatprep.subr.mxu0 0.0
    %140 = vmatpush1.msra.mxu0 0.0
    %141 = vmatprep.mubr.f32.mxu0 0.0
    %142 = vmatmul.mubr.f32.gmra.mrb[0].mxu0 %v72
    %v143 = vpop.f32.mrb[0].mxu0
    %v144 = vadd.f32 %v68, %v143
    %v145 = vpop.f32.mrb[0].mxu0
    %146 = vmatprep.mubr.f32.mxu0 0.0
    %147 = vmatmul.mubr.f32.gmra.mrb[0].mxu0 %v75
    %v148 = vpop.f32.mrb[0].mxu0
    %v149 = vadd.f32 %v68, %v148
    %v150 = vpop.f32.mrb[0].mxu0
    %151 = vdwg.mxu0
    %153 = vrot.lane.b32.xlu0 %v149, 32
    %v154 = vpop.permute.xlu0 %153
    %v156 = vsel %vm70, %v144, %v154
    %v157 = vld [vmem:[#allocation5] sm:$0xff]
    %vm158 = vcmask 64512
    %v160 = vsel %vm158, %v157, 0
    %162 = vmatprep.subr.mxu0 0.0
    %163 = vmatpush1.msra.mxu0 %v156
    %164 = vmatprep.subr.mxu0 0.0
    %165 = vmatpush1.msra.mxu0 0.0
    %166 = vmatprep.subr.mxu0 0.0
    %167 = vmatpush1.msra.mxu0 0.0
    %168 = vmatprep.subr.mxu0 0.0
    %169 = vmatpush1.msra.mxu0 0.0
    %170 = vmatprep.subr.mxu0 0.0
    %171 = vmatpush1.msra.mxu0 0.0
    %172 = vmatprep.subr.mxu0 0.0
    %173 = vmatpush1.msra.mxu0 0.0
    %174 = vmatprep.subr.mxu0 0.0
    %175 = vmatpush1.msra.mxu0 0.0
    %176 = vmatprep.subr.mxu0 0.0
    %177 = vmatpush1.msra.mxu0 0.0
    %178 = vmatprep.subr.mxu0 0.0
    %179 = vmatpush1.msra.mxu0 0.0
    %180 = vmatprep.subr.mxu0 0.0
    %181 = vmatpush1.msra.mxu0 0.0
    %182 = vmatprep.subr.mxu0 0.0
    %183 = vmatpush1.msra.mxu0 0.0
    %184 = vmatprep.subr.mxu0 0.0
    %185 = vmatpush1.msra.mxu0 0.0
    %186 = vmatprep.subr.mxu0 0.0
    %187 = vmatpush1.msra.mxu0 0.0
    %188 = vmatprep.subr.mxu0 0.0
    %189 = vmatpush1.msra.mxu0 0.0
    %190 = vmatprep.subr.mxu0 0.0
    %191 = vmatpush1.msra.mxu0 0.0
    %192 = vmatprep.subr.mxu0 0.0
    %193 = vmatpush1.msra.mxu0 0.0
    %194 = vmatprep.subr.mxu0 0.0
    %195 = vmatpush1.msra.mxu0 0.0
    %196 = vmatprep.subr.mxu0 0.0
    %197 = vmatpush1.msra.mxu0 0.0
    %198 = vmatprep.subr.mxu0 0.0
    %199 = vmatpush1.msra.mxu0 0.0
    %200 = vmatprep.subr.mxu0 0.0
    %201 = vmatpush1.msra.mxu0 0.0
    %202 = vmatprep.subr.mxu0 0.0
    %203 = vmatpush1.msra.mxu0 0.0
    %204 = vmatprep.subr.mxu0 0.0
    %205 = vmatpush1.msra.mxu0 0.0
    %206 = vmatprep.subr.mxu0 0.0
    %207 = vmatpush1.msra.mxu0 0.0
    %208 = vmatprep.subr.mxu0 0.0
    %209 = vmatpush1.msra.mxu0 0.0
    %210 = vmatprep.subr.mxu0 0.0
    %211 = vmatpush1.msra.mxu0 0.0
    %212 = vmatprep.subr.mxu0 0.0
    %213 = vmatpush1.msra.mxu0 0.0
    %214 = vmatprep.subr.mxu0 0.0
    %215 = vmatpush1.msra.mxu0 0.0
    %216 = vmatprep.subr.mxu0 0.0
    %217 = vmatpush1.msra.mxu0 0.0
    %218 = vmatprep.subr.mxu0 0.0
    %219 = vmatpush1.msra.mxu0 0.0
    %220 = vmatprep.subr.mxu0 0.0
    %221 = vmatpush1.msra.mxu0 0.0
    %222 = vmatprep.subr.mxu0 0.0
    %223 = vmatpush1.msra.mxu0 0.0
    %224 = vmatprep.subr.mxu0 0.0
    %225 = vmatpush1.msra.mxu0 0.0
    %226 = vmatprep.mubr.f32.mxu0 0.0
    %227 = vmatmul.mubr.f32.gmra.mrb[0].mxu0 %v160
    %v228 = vpop.f32.mrb[0].mxu0
    %v229 = vadd.f32 0.0, %v228
    %v230 = vpop.f32.mrb[0].mxu0
    %231 = vdwg.mxu0
    %vm232 = vcmask 523264
    %233 = vst.msk [vmem:[#allocation8] sm:$0xff] %vm232, %v229
    // Predicated region
    $region30: #{tpu_custom_call.1} parent=1 // pred_check
      _
    $region31: #{tpu_custom_call.1} parent=1 // pred_check_branch
      %235 = sbr.rel (0) target = $region33
    $region32: #{tpu_custom_call.1} parent=1 // pred_region
      %s237 = ssub.s32 128, 128
      %238 = vsyncadd [#allocation4], %s237
      %s240 = sshll.u32 [#allocation8], 4
      %s241 = int_to_ptr.vmem [resolvable:$true] %s240
      %243 = dma.vmem_to_hbm [thread:$0]  %s241, 128, %s4, [#allocation4]
    $region33: #{tpu_custom_call.1} parent=1 // pred_fallthru
      _
    // Predicated region
    $region34: #{tpu_custom_call.1} parent=1 // pred_check
      _
    $region35: #{tpu_custom_call.1} parent=1 // pred_check_branch
      %245 = sbr.rel (0) target = $region37
    $region36: #{tpu_custom_call.1} parent=1 // pred_region
      %246 = dma.done [#allocation4], 128
    $region37: #{tpu_custom_call.1} parent=1 // pred_fallthru
      _
    %247 = vsyncpa [#allocation3], 1
    %248 = vsyncpa [#allocation6], 1
    %249 = vsyncpa [#allocation4], 1

</llo_original>
